<compile_context>
chip_gen: v7x
topology: tpu7x:2x2x1
jax: 0.10.0
libtpu: 0.0.40
codegen_flags: <defaults>
</compile_context>

<pallas_src>
import jax
import jax.numpy as jnp
from jax.experimental import pallas as pl
from jax.experimental.pallas import tpu as pltpu

LANE = 128


def _round_up(n, m):
    return ((n + m - 1) // m) * m


def _pad_to(x, axis, size):
    pad = size - x.shape[axis]
    if pad <= 0:
        return x
    widths = [(0, 0)] * x.ndim
    widths[axis] = (0, pad)
    return jnp.pad(x, widths)


def _pick_tiles(B, P, cpp, *, tb_target=128, tp_target=64,
                block_budget_bytes=4 * 1024 * 1024):
    """Tile sizes: tb multiple of 8 (>=2 batch blocks when B allows), tp multiple
    of 16 (bf16 sublane packing) sized so the bf16 patch block fits the budget."""
    tb = max(8, min(tb_target, _round_up(pl.cdiv(B, 2), 8)))
    tb = min(tb, _round_up(B, 8))
    row_bytes = tb * cpp * 2                      # bf16 bytes per patch row slab
    tp_cap = max(16, (block_budget_bytes // row_bytes) // 16 * 16)
    tp = max(16, min(_round_up(tp_target, 16), tp_cap, _round_up(P, 16)))
    return tb, tp


def _wrapper_kernel(patches_ref, w_patch_ref, w_proj_ref, w_cls_ref, b_cls_ref,
                    out_ref, acc_ref):
    pj = pl.program_id(1)                         # patch (reduction) axis, innermost

    @pl.when(pj == 0)
    def _():
        acc_ref[...] = jnp.zeros_like(acc_ref)

    # Pool-before-GEMM: sum the streamed bf16 patch tile over the patch axis in
    # f32.  No per-step matmul; the MXU work happens once in the finalize step.
    acc_ref[...] += patches_ref[...].astype(jnp.float32).sum(axis=1)

    @pl.when(pj == pl.num_programs(1) - 1)
    def _():
        pooled = acc_ref[...]                                     # (tb, cpp) f32 sum
        x = jnp.dot(pooled, w_patch_ref[...],
                    preferred_element_type=jnp.float32)           # patch embed
        feats = jnp.dot(x, w_proj_ref[...],                       # 1/P folded in
                        preferred_element_type=jnp.float32)
        logits = jnp.dot(feats, w_cls_ref[...],
                         preferred_element_type=jnp.float32) + b_cls_ref[...]
        out_ref[...] = logits


def model_wrapper_forward(images, params, *, patch=8, tb_target=128, tp_target=64):
    """images: [B, C, H, W] float32 (NCHW, PyTorch convention)."""
    B, C, H, W = images.shape
    ph = pw = patch
    nH, nW = H // ph, W // pw
    P = nH * nW
    cpp = C * ph * pw
    num_classes = params["w_cls"].shape[1]

    # ---- host glue: extract non-overlapping patches (bf16 BEFORE the transpose
    # so the transposed HBM copy is half the bytes; pad+cast fuse in XLA). ----
    # TODO(synk): fold patchification into the DMA path (NHWC input + strided /
    # Element index_map) so patches stream HBM->VMEM without this extra HBM copy.
    patches = images.astype(jnp.bfloat16)
    patches = patches.reshape(B, C, nH, ph, nW, pw)
    patches = patches.transpose(0, 2, 4, 1, 3, 5).reshape(B, P, cpp)

    # ---- tiling: pad batch/patch dims to tile multiples (zeros are harmless for
    # the sum; padded batch rows are sliced off).  cpp stays at its natural size. ----
    tb, tp = _pick_tiles(B, P, cpp, tb_target=tb_target, tp_target=tp_target)
    B_pad = _round_up(B, tb)
    P_pad = _round_up(P, tp)
    patches = _pad_to(_pad_to(patches, 0, B_pad), 1, P_pad)       # [B_pad, P_pad, cpp] bf16

    # ---- weights: natural sizes (resident, tiny); only output lanes padded to 128. ----
    w_patch = params["w_patch"].astype(jnp.float32)               # [cpp, width]
    w_proj = (params["w_proj"] * (1.0 / P)).astype(jnp.float32)   # [width, embed], 1/P folded
    ncls_pad = _round_up(num_classes, LANE)
    w_cls = _pad_to(params["w_cls"].astype(jnp.float32), 1, ncls_pad)   # [embed, ncls_pad]
    b_cls = _pad_to(params["b_cls"].astype(jnp.float32), 1, ncls_pad)   # [1, ncls_pad]

    width = w_patch.shape[1]
    embed = w_proj.shape[1]
    grid = (B_pad // tb, P_pad // tp)

    # ---- explicit VMEM budget (v7x has 64 MiB physical; v5e default scoped is 16 MiB). ----
    patch_block_bytes = tb * tp * cpp * 2
    weight_bytes = 4 * (w_patch.size + w_proj.size + w_cls.size + b_cls.size)
    est = (2 * patch_block_bytes            # double-buffered streamed patches
           + 2 * weight_bytes               # resident weights (+ slack)
           + 2 * tb * ncls_pad * 4          # output block (double-buffered)
           + tb * cpp * 4                   # accumulator scratch
           + (4 << 20))                     # headroom
    vmem_limit = int(min(48 << 20, max(32 << 20, est)))

    out = pl.pallas_call(
        _wrapper_kernel,
        out_shape=jax.ShapeDtypeStruct((B_pad, ncls_pad), jnp.float32),
        grid_spec=pltpu.PrefetchScalarGridSpec(
            num_scalar_prefetch=0,
            grid=grid,
            in_specs=[
                # streamed patch tiles (only HBM-heavy operand)
                pl.BlockSpec((tb, tp, cpp), lambda i, j: (i, j, 0)),
                # resident weights / bias (full-dim blocks)
                pl.BlockSpec((cpp, width), lambda i, j: (0, 0)),
                pl.BlockSpec((width, embed), lambda i, j: (0, 0)),
                pl.BlockSpec((embed, ncls_pad), lambda i, j: (0, 0)),
                pl.BlockSpec((1, ncls_pad), lambda i, j: (0, 0)),
            ],
            out_specs=pl.BlockSpec((tb, ncls_pad), lambda i, j: (i, 0)),
            scratch_shapes=[pltpu.VMEM((tb, cpp), jnp.float32)],
        ),
        compiler_params=pltpu.CompilerParams(
            dimension_semantics=("parallel", "arbitrary"),
            vmem_limit_bytes=vmem_limit),
    )(patches, w_patch, w_proj, w_cls, b_cls)

    return out[:B, :num_classes]


def init_params(key, *, in_chans=3, patch=8, width=64, embed_dim=32,
                num_classes=10):
    k1, k2, k3, k4 = jax.random.split(key, 4)
    cpp = in_chans * patch * patch
    return {
        # patch-embed conv weight, flattened to [C*ph*pw, width]
        "w_patch": 0.02 * jax.random.normal(k1, (cpp, width), jnp.float32),
        # projection to CLIP embed dim
        "w_proj": 0.02 * jax.random.normal(k2, (width, embed_dim), jnp.float32),
        # linear-probe classifier (weight + bias)
        "w_cls": 0.02 * jax.random.normal(k3, (embed_dim, num_classes), jnp.float32),
        "b_cls": 0.01 * jax.random.normal(k4, (1, num_classes), jnp.float32),
    }


if __name__ == "__main__":
    key = jax.random.PRNGKey(0)
    k_img, k_par = jax.random.split(key)

    B, C, H, W = 2, 3, 16, 16          # small NCHW images
    images = jax.random.normal(k_img, (B, C, H, W), jnp.float32)

    params = init_params(k_par, in_chans=C, patch=8, width=64,
                         embed_dim=32, num_classes=10)

    logits = model_wrapper_forward(images, params, patch=8)
    logits = jax.block_until_ready(logits)

    # ---- reference check in plain JAX (pool-before-GEMM order: bf16 patches are
    # mean-pooled in f32, then the f32 GEMM chain runs — same as the kernel). ----
    ph = 8
    nH, nW = H // ph, W // ph
    P = nH * nW
    cpp = C * ph * ph
    patches = images.reshape(B, C, nH, ph, nW, ph).transpose(0, 2, 4, 1, 3, 5)
    patches = patches.reshape(B, P, cpp)
    pooled = patches.astype(jnp.bfloat16).astype(jnp.float32).mean(axis=1)
    hi = jax.lax.Precision.HIGHEST
    x = jnp.dot(pooled, params["w_patch"], precision=hi)
    feats = jnp.dot(x, params["w_proj"], precision=hi)
    ref = jnp.dot(feats, params["w_cls"], precision=hi) + params["b_cls"]
    assert jnp.allclose(logits, ref, atol=1e-4, rtol=1e-3), "mismatch vs reference"

    # TODO(synk): full CLIP ViT transformer blocks (MHSA + MLP + LN) are not
    # reproduced; encode_image is approximated as patch-embed -> mean-pool -> proj.
    print("KERNEL_OK")
</pallas_src>

<mosaic_0001>
module attributes {stable_mosaic.version = 11 : i64} {
  func.func @_wrapper_kernel(%arg0: i32, %arg1: i32, %arg2: memref<8x16x192xbf16, #tpu.memory_space<vmem>>, %arg3: memref<192x64xf32, #tpu.memory_space<vmem>>, %arg4: memref<64x32xf32, #tpu.memory_space<vmem>>, %arg5: memref<32x128xf32, #tpu.memory_space<vmem>>, %arg6: memref<1x128xf32, #tpu.memory_space<vmem>>, %arg7: memref<8x128xf32, #tpu.memory_space<vmem>>, %arg8: memref<8x192xf32, #tpu.memory_space<vmem>>) attributes {dimension_semantics = [#tpu.dimension_semantics<parallel>, #tpu.dimension_semantics<arbitrary>], iteration_bounds = array<i64: 1, 1>, scalar_prefetch = 0 : i64, scratch_operands = 1 : i64, tpu.core_type = #tpu.core_type<tc>, window_params = [{transform_indices = @transform_0, window_bounds = array<i64: 8, 16, 192>}, {pipeline_mode = #tpu.pipeline_mode<synchronous>, transform_indices = @transform_1, window_bounds = array<i64: 192, 64>}, {pipeline_mode = #tpu.pipeline_mode<synchronous>, transform_indices = @transform_2, window_bounds = array<i64: 64, 32>}, {pipeline_mode = #tpu.pipeline_mode<synchronous>, transform_indices = @transform_3, window_bounds = array<i64: 32, 128>}, {pipeline_mode = #tpu.pipeline_mode<synchronous>, transform_indices = @transform_4, window_bounds = array<i64: 1, 128>}, {transform_indices = @transform_5, window_bounds = array<i64: 8, 128>}]} {
    %c0_i32 = arith.constant 0 : i32
    %0 = arith.cmpi eq, %arg1, %c0_i32 : i32
    %1 = arith.extui %0 : i1 to i32
    %c0_i32_0 = arith.constant 0 : i32
    %2 = arith.cmpi ne, %1, %c0_i32_0 : i32
    scf.if %2 {
      %cst_9 = arith.constant 0.000000e+00 : f32
      %12 = vector.broadcast %cst_9 : f32 to vector<8x192xf32>
      %c0_10 = arith.constant 0 : index
      %c0_11 = arith.constant 0 : index
      %13 = vector.load %arg8[%c0_10, %c0_11] : memref<8x192xf32, #tpu.memory_space<vmem>>, vector<8x192xf32>
      tpu.vector_store %arg8[%c0_10, %c0_11], %12 {strides = array<i32>} : memref<8x192xf32, #tpu.memory_space<vmem>>, vector<8x192xf32>,
    } else {
    }
    %c0 = arith.constant 0 : index
    %c0_1 = arith.constant 0 : index
    %3 = vector.load %arg8[%c0, %c0_1] : memref<8x192xf32, #tpu.memory_space<vmem>>, vector<8x192xf32>
    %c0_2 = arith.constant 0 : index
    %c0_3 = arith.constant 0 : index
    %c0_4 = arith.constant 0 : index
    %4 = vector.load %arg2[%c0_2, %c0_3, %c0_4] : memref<8x16x192xbf16, #tpu.memory_space<vmem>>, vector<8x16x192xbf16>
    %5 = arith.extf %4 : vector<8x16x192xbf16> to vector<8x16x192xf32>
    %cst = arith.constant dense<0.000000e+00> : vector<8x192xf32>
    %6 = vector.multi_reduction <add>, %5, %cst [1] : vector<8x16x192xf32> to vector<8x192xf32>
    %7 = arith.addf %3, %6 : vector<8x192xf32>
    %c0_5 = arith.constant 0 : index
    %c0_6 = arith.constant 0 : index
    %8 = vector.load %arg8[%c0_5, %c0_6] : memref<8x192xf32, #tpu.memory_space<vmem>>, vector<8x192xf32>
    tpu.vector_store %arg8[%c0_5, %c0_6], %7 {strides = array<i32>} : memref<8x192xf32, #tpu.memory_space<vmem>>, vector<8x192xf32>,
    %c0_i32_7 = arith.constant 0 : i32
    %9 = arith.cmpi eq, %arg1, %c0_i32_7 : i32
    %10 = arith.extui %9 : i1 to i32
    %c0_i32_8 = arith.constant 0 : i32
    %11 = arith.cmpi ne, %10, %c0_i32_8 : i32
    scf.if %11 {
      %c0_9 = arith.constant 0 : index
      %c0_10 = arith.constant 0 : index
      %12 = vector.load %arg8[%c0_9, %c0_10] : memref<8x192xf32, #tpu.memory_space<vmem>>, vector<8x192xf32>
      %c0_11 = arith.constant 0 : index
      %c0_12 = arith.constant 0 : index
      %13 = vector.load %arg3[%c0_11, %c0_12] : memref<192x64xf32, #tpu.memory_space<vmem>>, vector<192x64xf32>
      %cst_13 = arith.constant dense<0.000000e+00> : vector<8x64xf32>
      %14 = tpu.matmul %12, %13, %cst_13 {dimension_numbers = #tpu.dot_dimension_numbers<[1], [0], [0], [1], [0, 0, 1, 1], [], []>} : vector<8x192xf32>, vector<192x64xf32>, vector<8x64xf32> -> vector<8x64xf32>
      %c0_14 = arith.constant 0 : index
      %c0_15 = arith.constant 0 : index
      %15 = vector.load %arg4[%c0_14, %c0_15] : memref<64x32xf32, #tpu.memory_space<vmem>>, vector<64x32xf32>
      %cst_16 = arith.constant dense<0.000000e+00> : vector<8x32xf32>
      %16 = tpu.matmul %14, %15, %cst_16 {dimension_numbers = #tpu.dot_dimension_numbers<[1], [0], [0], [1], [0, 0, 1, 1], [], []>} : vector<8x64xf32>, vector<64x32xf32>, vector<8x32xf32> -> vector<8x32xf32>
      %c0_17 = arith.constant 0 : index
      %c0_18 = arith.constant 0 : index
      %17 = vector.load %arg5[%c0_17, %c0_18] : memref<32x128xf32, #tpu.memory_space<vmem>>, vector<32x128xf32>
      %cst_19 = arith.constant dense<0.000000e+00> : vector<8x128xf32>
      %18 = tpu.matmul %16, %17, %cst_19 {dimension_numbers = #tpu.dot_dimension_numbers<[1], [0], [0], [1], [0, 0, 1, 1], [], []>} : vector<8x32xf32>, vector<32x128xf32>, vector<8x128xf32> -> vector<8x128xf32>
      %c0_20 = arith.constant 0 : index
      %c0_21 = arith.constant 0 : index
      %19 = vector.load %arg6[%c0_20, %c0_21] : memref<1x128xf32, #tpu.memory_space<vmem>>, vector<1x128xf32>
      %20 = vector.broadcast %19 : vector<1x128xf32> to vector<8x128xf32>
      %21 = arith.addf %18, %20 : vector<8x128xf32>
      %c0_22 = arith.constant 0 : index
      %c0_23 = arith.constant 0 : index
      %22 = vector.load %arg7[%c0_22, %c0_23] : memref<8x128xf32, #tpu.memory_space<vmem>>, vector<8x128xf32>
      tpu.vector_store %arg7[%c0_22, %c0_23], %21 {strides = array<i32>} : memref<8x128xf32, #tpu.memory_space<vmem>>, vector<8x128xf32>,
    } else {
    }
    return
  }
  func.func @transform_0(%arg0: i32, %arg1: i32) -> (i32, i32, i32) {
    %c0_i32 = arith.constant 0 : i32
    %c0_i32_0 = arith.constant 0 : i32
    return %arg0, %arg1, %c0_i32 : i32, i32, i32
  }
  func.func @transform_1(%arg0: i32, %arg1: i32) -> (i32, i32) {
    %c0_i32 = arith.constant 0 : i32
    %c0_i32_0 = arith.constant 0 : i32
    %c0_i32_1 = arith.constant 0 : i32
    return %c0_i32, %c0_i32_0 : i32, i32
  }
  func.func @transform_2(%arg0: i32, %arg1: i32) -> (i32, i32) {
    %c0_i32 = arith.constant 0 : i32
    %c0_i32_0 = arith.constant 0 : i32
    %c0_i32_1 = arith.constant 0 : i32
    return %c0_i32, %c0_i32_0 : i32, i32
  }
  func.func @transform_3(%arg0: i32, %arg1: i32) -> (i32, i32) {
    %c0_i32 = arith.constant 0 : i32
    %c0_i32_0 = arith.constant 0 : i32
    %c0_i32_1 = arith.constant 0 : i32
    return %c0_i32, %c0_i32_0 : i32, i32
  }
  func.func @transform_4(%arg0: i32, %arg1: i32) -> (i32, i32) {
    %c0_i32 = arith.constant 0 : i32
    %c0_i32_0 = arith.constant 0 : i32
    %c0_i32_1 = arith.constant 0 : i32
    return %c0_i32, %c0_i32_0 : i32, i32
  }
  func.func @transform_5(%arg0: i32, %arg1: i32) -> (i32, i32) {
    %c0_i32 = arith.constant 0 : i32
    %c0_i32_0 = arith.constant 0 : i32
    return %arg0, %c0_i32 : i32, i32
  }
}

</mosaic_0001>

<llo_original>
// kernel: tpu_custom_call.1
$region0: #{tpu_custom_call.1}
  #allocation0 [shape = 'u32[]', space=smem, size = 0x4, offset = 0x4, fixed_abs, tag = 'smem constant byte address 0x4 - core index']
  #allocation1 [shape = 'u32[144,128]{1,0:T(1,128)}', space=vmem, size = 0x12000, scoped, tag = 'internal scratch']
  #allocation2 [shape = 'f32[8,192]{1,0:T(8,128)}', space=vmem, size = 0x2000, scoped, tag = 'scratch operand']
  %s0 = inlined_call_operand.vmem [shape: bf16[8,16,192], index: 0, kind: input, shape index: {}]
  %s1 = inlined_call_operand.vmem [shape: f32[192,64], index: 1, kind: input, shape index: {}]
  %s2 = inlined_call_operand.vmem [shape: f32[64,32], index: 2, kind: input, shape index: {}]
  %s3 = inlined_call_operand.vmem [shape: f32[32,128], index: 3, kind: input, shape index: {}]
  %s4 = inlined_call_operand.vmem [shape: f32[1,128], index: 4, kind: input, shape index: {}]
  %s5 = inlined_call_operand.hbm [shape: f32[8,128], index: 5, kind: output, shape index: {}]
  %s6 = sld [smem:[#allocation0]]
  $region38: #{tpu_custom_call.1} parent=0
    _
  %s8 = ssub.s32 1, %s6
  %s9 = scalar_select 0, %s8, %s6
  $region1: #{tpu_custom_call.1} parent=0
    #allocation3 [shape = 'u8[4096]{0}', space=vmem, size = 0x1000, scoped, tag = 'output window, operand 0, single buffered']
    #allocation4 [shape = 's32[1]{0}', space=sflag, size = 0x4, scoped, tag = 'scoped memory for tpu_custom_call.1']
    %10 = vsyncpa [#allocation4], 0
    // Predicated region
    $region2: #{tpu_custom_call.1} parent=1 // pred_check
      _
    $region3: #{tpu_custom_call.1} parent=1 // pred_check_branch
      %12 = sbr.rel (0) target = $region5
    $region4: #{tpu_custom_call.1} parent=1 // pred_region
      _
    $region5: #{tpu_custom_call.1} parent=1 // pred_fallthru
      _
    // Predicated region
    $region6: #{tpu_custom_call.1} parent=1 // pred_check
      _
    $region7: #{tpu_custom_call.1} parent=1 // pred_check_branch
      %14 = sbr.rel (0) target = $region9
    $region8: #{tpu_custom_call.1} parent=1 // pred_region
      _
    $region9: #{tpu_custom_call.1} parent=1 // pred_fallthru
      _
    // Predicated region
    $region10: #{tpu_custom_call.1} parent=1 // pred_check
      _
    $region11: #{tpu_custom_call.1} parent=1 // pred_check_branch
      %16 = sbr.rel (0) target = $region13
    $region12: #{tpu_custom_call.1} parent=1 // pred_region
      _
    $region13: #{tpu_custom_call.1} parent=1 // pred_fallthru
      _
    // Predicated region
    $region14: #{tpu_custom_call.1} parent=1 // pred_check
      _
    $region15: #{tpu_custom_call.1} parent=1 // pred_check_branch
      %18 = sbr.rel (0) target = $region17
    $region16: #{tpu_custom_call.1} parent=1 // pred_region
      _
    $region17: #{tpu_custom_call.1} parent=1 // pred_fallthru
      _
    // Predicated region
    $region18: #{tpu_custom_call.1} parent=1 // pred_check
      _
    $region19: #{tpu_custom_call.1} parent=1 // pred_check_branch
      %20 = sbr.rel (0) target = $region21
    $region20: #{tpu_custom_call.1} parent=1 // pred_region
      _
    $region21: #{tpu_custom_call.1} parent=1 // pred_fallthru
      _
    %p21 = scmp.eq.s32.totalorder 0, 0
    // Predicated region
    $region22: #{tpu_custom_call.1} parent=1 // pred_check
      %p22 = pneg %p21
    $region23: #{tpu_custom_call.1} parent=1 // pred_check_branch
      %24 = sbr.rel (%p22) target = $region25
    $region24: #{tpu_custom_call.1} parent=1 // pred_region
      %25 = vst [vmem:[#allocation2] sm:$0xff] 0.0
      %vm26 = vcmask 523264
      %27 = vst.msk [vmem:[#allocation2 + $0x8] sm:$0xff] %vm26, 0.0
    $region25: #{tpu_custom_call.1} parent=1 // pred_fallthru
      _
    %v28 = vld [vmem:[#allocation2] sm:$0xff]
    %v29 = vld [vmem:[#allocation2 + $0x8] sm:$0xff]
    %v30 = vld [vmem:[%s0] sm:$0xff]
    %v31 = vld [vmem:[%s0 + $0x8] sm:$0xff]
    %v32 = vld [vmem:[%s0 + $0x10] sm:$0xff]
    %v33 = vld [vmem:[%s0 + $0x18] sm:$0xff]
    %v34 = vld [vmem:[%s0 + $0x20] sm:$0xff]
    %v35 = vld [vmem:[%s0 + $0x28] sm:$0xff]
    %v36 = vld [vmem:[%s0 + $0x30] sm:$0xff]
    %v37 = vld [vmem:[%s0 + $0x38] sm:$0xff]
    %v38 = vld [vmem:[%s0 + $0x40] sm:$0xff]
    %v39 = vld [vmem:[%s0 + $0x48] sm:$0xff]
    %v40 = vld [vmem:[%s0 + $0x50] sm:$0xff]
    %v41 = vld [vmem:[%s0 + $0x58] sm:$0xff]
    %v42 = vld [vmem:[%s0 + $0x60] sm:$0xff]
    %v43 = vld [vmem:[%s0 + $0x68] sm:$0xff]
    %v44 = vld [vmem:[%s0 + $0x70] sm:$0xff]
    %v45 = vld [vmem:[%s0 + $0x78] sm:$0xff]
    %v46 = vunpack.c.l.bf16 %v30
    %v47 = vunpack.c.h.bf16 %v30
    %v48 = vunpack.c.l.bf16 %v31
    %v49 = vunpack.c.h.bf16 %v31
    %v50 = vunpack.c.l.bf16 %v32
    %v51 = vunpack.c.h.bf16 %v32
    %v52 = vunpack.c.l.bf16 %v33
    %v53 = vunpack.c.h.bf16 %v33
    %v54 = vunpack.c.l.bf16 %v34
    %v55 = vunpack.c.h.bf16 %v34
    %v56 = vunpack.c.l.bf16 %v35
    %v57 = vunpack.c.h.bf16 %v35
    %v58 = vunpack.c.l.bf16 %v36
    %v59 = vunpack.c.h.bf16 %v36
    %v60 = vunpack.c.l.bf16 %v37
    %v61 = vunpack.c.h.bf16 %v37
    %v62 = vunpack.c.l.bf16 %v38
    %v63 = vunpack.c.h.bf16 %v38
    %v64 = vunpack.c.l.bf16 %v39
    %v65 = vunpack.c.h.bf16 %v39
    %v66 = vunpack.c.l.bf16 %v40
    %v67 = vunpack.c.h.bf16 %v40
    %v68 = vunpack.c.l.bf16 %v41
    %v69 = vunpack.c.h.bf16 %v41
    %v70 = vunpack.c.l.bf16 %v42
    %v71 = vunpack.c.h.bf16 %v42
    %v72 = vunpack.c.l.bf16 %v43
    %v73 = vunpack.c.h.bf16 %v43
    %v74 = vunpack.c.l.bf16 %v44
    %v75 = vunpack.c.h.bf16 %v44
    %v76 = vunpack.c.l.bf16 %v45
    %v77 = vunpack.c.h.bf16 %v45
    %v78 = vadd.f32 %v46, %v48
    %v79 = vrot.slane %v78, 4
    %v80 = vadd.f32 %v78, %v79
    %v81 = vrot.slane %v80, 2
    %v82 = vadd.f32 %v80, %v81
    %v83 = vrot.slane %v82, 1
    %v84 = vadd.f32 %v82, %v83
    %vm85 = vcmask 523264
    %v86 = vsel %vm85, %v47, 0.0
    %v87 = vsel %vm85, %v49, 0.0
    %v88 = vadd.f32 %v86, %v87
    %v89 = vrot.slane %v88, 4
    %v90 = vadd.f32 %v88, %v89
    %v91 = vrot.slane %v90, 2
    %v92 = vadd.f32 %v90, %v91
    %v93 = vrot.slane %v92, 1
    %v94 = vadd.f32 %v92, %v93
    %v95 = vadd.f32 %v50, %v52
    %v96 = vrot.slane %v95, 4
    %v97 = vadd.f32 %v95, %v96
    %v98 = vrot.slane %v97, 2
    %v99 = vadd.f32 %v97, %v98
    %v100 = vrot.slane %v99, 1
    %v101 = vadd.f32 %v99, %v100
    %v102 = vsel %vm85, %v51, 0.0
    %v103 = vsel %vm85, %v53, 0.0
    %v104 = vadd.f32 %v102, %v103
    %v105 = vrot.slane %v104, 4
    %v106 = vadd.f32 %v104, %v105
    %v107 = vrot.slane %v106, 2
    %v108 = vadd.f32 %v106, %v107
    %v109 = vrot.slane %v108, 1
    %v110 = vadd.f32 %v108, %v109
    %v111 = vadd.f32 %v54, %v56
    %v112 = vrot.slane %v111, 4
    %v113 = vadd.f32 %v111, %v112
    %v114 = vrot.slane %v113, 2
    %v115 = vadd.f32 %v113, %v114
    %v116 = vrot.slane %v115, 1
    %v117 = vadd.f32 %v115, %v116
    %v118 = vsel %vm85, %v55, 0.0
    %v119 = vsel %vm85, %v57, 0.0
    %v120 = vadd.f32 %v118, %v119
    %v121 = vrot.slane %v120, 4
    %v122 = vadd.f32 %v120, %v121
    %v123 = vrot.slane %v122, 2
    %v124 = vadd.f32 %v122, %v123
    %v125 = vrot.slane %v124, 1
    %v126 = vadd.f32 %v124, %v125
    %v127 = vadd.f32 %v58, %v60
    %v128 = vrot.slane %v127, 4
    %v129 = vadd.f32 %v127, %v128
    %v130 = vrot.slane %v129, 2
    %v131 = vadd.f32 %v129, %v130
    %v132 = vrot.slane %v131, 1
    %v133 = vadd.f32 %v131, %v132
    %v134 = vsel %vm85, %v59, 0.0
    %v135 = vsel %vm85, %v61, 0.0
    %v136 = vadd.f32 %v134, %v135
    %v137 = vrot.slane %v136, 4
    %v138 = vadd.f32 %v136, %v137
    %v139 = vrot.slane %v138, 2
    %v140 = vadd.f32 %v138, %v139
    %v141 = vrot.slane %v140, 1
    %v142 = vadd.f32 %v140, %v141
    %v143 = vadd.f32 %v62, %v64
    %v144 = vrot.slane %v143, 4
    %v145 = vadd.f32 %v143, %v144
    %v146 = vrot.slane %v145, 2
    %v147 = vadd.f32 %v145, %v146
    %v148 = vrot.slane %v147, 1
    %v149 = vadd.f32 %v147, %v148
    %v150 = vsel %vm85, %v63, 0.0
    %v151 = vsel %vm85, %v65, 0.0
    %v152 = vadd.f32 %v150, %v151
    %v153 = vrot.slane %v152, 4
    %v154 = vadd.f32 %v152, %v153
    %v155 = vrot.slane %v154, 2
    %v156 = vadd.f32 %v154, %v155
    %v157 = vrot.slane %v156, 1
    %v158 = vadd.f32 %v156, %v157
    %v159 = vadd.f32 %v66, %v68
    %v160 = vrot.slane %v159, 4
    %v161 = vadd.f32 %v159, %v160
    %v162 = vrot.slane %v161, 2
    %v163 = vadd.f32 %v161, %v162
    %v164 = vrot.slane %v163, 1
    %v165 = vadd.f32 %v163, %v164
    %v166 = vsel %vm85, %v67, 0.0
    %v167 = vsel %vm85, %v69, 0.0
    %v168 = vadd.f32 %v166, %v167
    %v169 = vrot.slane %v168, 4
    %v170 = vadd.f32 %v168, %v169
    %v171 = vrot.slane %v170, 2
    %v172 = vadd.f32 %v170, %v171
    %v173 = vrot.slane %v172, 1
    %v174 = vadd.f32 %v172, %v173
    %v175 = vadd.f32 %v70, %v72
    %v176 = vrot.slane %v175, 4
    %v177 = vadd.f32 %v175, %v176
    %v178 = vrot.slane %v177, 2
    %v179 = vadd.f32 %v177, %v178
    %v180 = vrot.slane %v179, 1
    %v181 = vadd.f32 %v179, %v180
    %v182 = vsel %vm85, %v71, 0.0
    %v183 = vsel %vm85, %v73, 0.0
    %v184 = vadd.f32 %v182, %v183
    %v185 = vrot.slane %v184, 4
    %v186 = vadd.f32 %v184, %v185
    %v187 = vrot.slane %v186, 2
    %v188 = vadd.f32 %v186, %v187
    %v189 = vrot.slane %v188, 1
    %v190 = vadd.f32 %v188, %v189
    %v191 = vadd.f32 %v74, %v76
    %v192 = vrot.slane %v191, 4
    %v193 = vadd.f32 %v191, %v192
    %v194 = vrot.slane %v193, 2
    %v195 = vadd.f32 %v193, %v194
    %v196 = vrot.slane %v195, 1
    %v197 = vadd.f32 %v195, %v196
    %v198 = vsel %vm85, %v75, 0.0
    %v199 = vsel %vm85, %v77, 0.0
    %v200 = vadd.f32 %v198, %v199
    %v201 = vrot.slane %v200, 4
    %v202 = vadd.f32 %v200, %v201
    %v203 = vrot.slane %v202, 2
    %v204 = vadd.f32 %v202, %v203
    %v205 = vrot.slane %v204, 1
    %v206 = vadd.f32 %v204, %v205
    %vm223 = vcmask 1041409
    %v224 = vsel %vm223, %v101, %v84
    %vm225 = vcmask 1042434
    %v226 = vsel %vm225, %v117, %v224
    %vm227 = vcmask 1043459
    %v228 = vsel %vm227, %v133, %v226
    %vm229 = vcmask 1044484
    %v230 = vsel %vm229, %v149, %v228
    %vm231 = vcmask 1045509
    %v232 = vsel %vm231, %v165, %v230
    %vm233 = vcmask 1046534
    %v234 = vsel %vm233, %v181, %v232
    %vm235 = vcmask 1047559
    %v236 = vsel %vm235, %v197, %v234
    %v237 = vsel %vm223, %v110, %v94
    %v238 = vsel %vm225, %v126, %v237
    %v239 = vsel %vm227, %v142, %v238
    %v240 = vsel %vm229, %v158, %v239
    %v241 = vsel %vm231, %v174, %v240
    %v242 = vsel %vm233, %v190, %v241
    %v243 = vsel %vm235, %v206, %v242
    %v246 = vadd.f32 %v28, %v236
    %v247 = vadd.f32 %v29, %v243
    %248 = vst [vmem:[#allocation2] sm:$0xff] %v246
    %249 = vst.msk [vmem:[#allocation2 + $0x8] sm:$0xff] %vm85, %v247
    // Predicated region
    $region26: #{tpu_custom_call.1} parent=1 // pred_check
      %p250 = pneg %p21
    $region27: #{tpu_custom_call.1} parent=1 // pred_check_branch
      %252 = sbr.rel (%p250) target = $region29
    $region28: #{tpu_custom_call.1} parent=1 // pred_region
      %v253 = vld [vmem:[#allocation2] sm:$0xff]
      %v254 = vld [vmem:[#allocation2 + $0x8] sm:$0xff]
      %v255 = vld [vmem:[%s1] sm:$0xff]
      %v256 = vld [vmem:[%s1 + $0x8] sm:$0xff]
      %v257 = vld [vmem:[%s1 + $0x10] sm:$0xff]
      %v258 = vld [vmem:[%s1 + $0x18] sm:$0xff]
      %v259 = vld [vmem:[%s1 + $0x20] sm:$0xff]
      %v260 = vld [vmem:[%s1 + $0x28] sm:$0xff]
      %v261 = vld [vmem:[%s1 + $0x30] sm:$0xff]
      %v262 = vld [vmem:[%s1 + $0x38] sm:$0xff]
      %v263 = vld [vmem:[%s1 + $0x40] sm:$0xff]
      %v264 = vld [vmem:[%s1 + $0x48] sm:$0xff]
      %v265 = vld [vmem:[%s1 + $0x50] sm:$0xff]
      %v266 = vld [vmem:[%s1 + $0x58] sm:$0xff]
      %v267 = vld [vmem:[%s1 + $0x60] sm:$0xff]
      %v268 = vld [vmem:[%s1 + $0x68] sm:$0xff]
      %v269 = vld [vmem:[%s1 + $0x70] sm:$0xff]
      %v270 = vld [vmem:[%s1 + $0x78] sm:$0xff]
      %v271 = vld [vmem:[%s1 + $0x80] sm:$0xff]
      %v272 = vld [vmem:[%s1 + $0x88] sm:$0xff]
      %v273 = vld [vmem:[%s1 + $0x90] sm:$0xff]
      %v274 = vld [vmem:[%s1 + $0x98] sm:$0xff]
      %v275 = vld [vmem:[%s1 + $0xa0] sm:$0xff]
      %v276 = vld [vmem:[%s1 + $0xa8] sm:$0xff]
      %v277 = vld [vmem:[%s1 + $0xb0] sm:$0xff]
      %v278 = vld [vmem:[%s1 + $0xb8] sm:$0xff]
      %v280 = vsel %vm85, %v254, 0
      %282 = vmatprep.subr.mxu0 0.0
      %283 = vmatpush1.msra.mxu0 %v255
      %284 = vmatprep.subr.mxu0 0.0
      %285 = vmatpush1.msra.mxu0 %v256
      %286 = vmatprep.subr.mxu0 0.0
      %287 = vmatpush1.msra.mxu0 %v257
      %288 = vmatprep.subr.mxu0 0.0
      %289 = vmatpush1.msra.mxu0 %v258
      %290 = vmatprep.subr.mxu0 0.0
      %291 = vmatpush1.msra.mxu0 %v259
      %292 = vmatprep.subr.mxu0 0.0
      %293 = vmatpush1.msra.mxu0 %v260
      %294 = vmatprep.subr.mxu0 0.0
      %295 = vmatpush1.msra.mxu0 %v261
      %296 = vmatprep.subr.mxu0 0.0
      %297 = vmatpush1.msra.mxu0 %v262
      %298 = vmatprep.subr.mxu0 0.0
      %299 = vmatpush1.msra.mxu0 %v263
      %300 = vmatprep.subr.mxu0 0.0
      %301 = vmatpush1.msra.mxu0 %v264
      %302 = vmatprep.subr.mxu0 0.0
      %303 = vmatpush1.msra.mxu0 %v265
      %304 = vmatprep.subr.mxu0 0.0
      %305 = vmatpush1.msra.mxu0 %v266
      %306 = vmatprep.subr.mxu0 0.0
      %307 = vmatpush1.msra.mxu0 %v267
      %308 = vmatprep.subr.mxu0 0.0
      %309 = vmatpush1.msra.mxu0 %v268
      %310 = vmatprep.subr.mxu0 0.0
      %311 = vmatpush1.msra.mxu0 %v269
      %312 = vmatprep.subr.mxu0 0.0
      %313 = vmatpush1.msra.mxu0 %v270
      %314 = vmatprep.subr.mxu0 0.0
      %315 = vmatpush1.msra.mxu0 %v271
      %316 = vmatprep.subr.mxu0 0.0
      %317 = vmatpush1.msra.mxu0 %v272
      %318 = vmatprep.subr.mxu0 0.0
      %319 = vmatpush1.msra.mxu0 %v273
      %320 = vmatprep.subr.mxu0 0.0
      %321 = vmatpush1.msra.mxu0 %v274
      %322 = vmatprep.subr.mxu0 0.0
      %323 = vmatpush1.msra.mxu0 %v275
      %324 = vmatprep.subr.mxu0 0.0
      %325 = vmatpush1.msra.mxu0 %v276
      %326 = vmatprep.subr.mxu0 0.0
      %327 = vmatpush1.msra.mxu0 %v277
      %328 = vmatprep.subr.mxu0 0.0
      %329 = vmatpush1.msra.mxu0 %v278
      %330 = vmatprep.subr.mxu0 0.0
      %331 = vmatpush1.msra.mxu0 0.0
      %332 = vmatprep.subr.mxu0 0.0
      %333 = vmatpush1.msra.mxu0 0.0
      %334 = vmatprep.subr.mxu0 0.0
      %335 = vmatpush1.msra.mxu0 0.0
      %336 = vmatprep.subr.mxu0 0.0
      %337 = vmatpush1.msra.mxu0 0.0
      %338 = vmatprep.subr.mxu0 0.0
      %339 = vmatpush1.msra.mxu0 0.0
      %340 = vmatprep.subr.mxu0 0.0
      %341 = vmatpush1.msra.mxu0 0.0
      %342 = vmatprep.subr.mxu0 0.0
      %343 = vmatpush1.msra.mxu0 0.0
      %344 = vmatprep.subr.mxu0 0.0
      %345 = vmatpush1.msra.mxu0 0.0
      %346 = vmatprep.mubr.f32.mxu0 %v280
      %347 = vmatmul.mubr.f32.gmra.mrb[0].mxu0 %v253
      %v348 = vpop.f32.mrb[0].mxu0
      %v349 = vadd.f32 0.0, %v348
      %v350 = vpop.f32.mrb[0].mxu0
      %351 = vdwg.mxu0
      %v352 = vld [vmem:[%s2] sm:$0xff]
      %v353 = vld [vmem:[%s2 + $0x8] sm:$0xff]
      %v354 = vld [vmem:[%s2 + $0x10] sm:$0xff]
      %v355 = vld [vmem:[%s2 + $0x18] sm:$0xff]
      %v356 = vld [vmem:[%s2 + $0x20] sm:$0xff]
      %v357 = vld [vmem:[%s2 + $0x28] sm:$0xff]
      %v358 = vld [vmem:[%s2 + $0x30] sm:$0xff]
      %v359 = vld [vmem:[%s2 + $0x38] sm:$0xff]
      %v361 = vsel %vm85, %v349, 0
      %363 = vmatprep.subr.mxu0 0.0
      %364 = vmatpush1.msra.mxu0 %v352
      %365 = vmatprep.subr.mxu0 0.0
      %366 = vmatpush1.msra.mxu0 %v353
      %367 = vmatprep.subr.mxu0 0.0
      %368 = vmatpush1.msra.mxu0 %v354
      %369 = vmatprep.subr.mxu0 0.0
      %370 = vmatpush1.msra.mxu0 %v355
      %371 = vmatprep.subr.mxu0 0.0
      %372 = vmatpush1.msra.mxu0 %v356
      %373 = vmatprep.subr.mxu0 0.0
      %374 = vmatpush1.msra.mxu0 %v357
      %375 = vmatprep.subr.mxu0 0.0
      %376 = vmatpush1.msra.mxu0 %v358
      %377 = vmatprep.subr.mxu0 0.0
      %378 = vmatpush1.msra.mxu0 %v359
      %379 = vmatprep.subr.mxu0 0.0
      %380 = vmatpush1.msra.mxu0 0.0
      %381 = vmatprep.subr.mxu0 0.0
      %382 = vmatpush1.msra.mxu0 0.0
      %383 = vmatprep.subr.mxu0 0.0
      %384 = vmatpush1.msra.mxu0 0.0
      %385 = vmatprep.subr.mxu0 0.0
      %386 = vmatpush1.msra.mxu0 0.0
      %387 = vmatprep.subr.mxu0 0.0
      %388 = vmatpush1.msra.mxu0 0.0
      %389 = vmatprep.subr.mxu0 0.0
      %390 = vmatpush1.msra.mxu0 0.0
      %391 = vmatprep.subr.mxu0 0.0
      %392 = vmatpush1.msra.mxu0 0.0
      %393 = vmatprep.subr.mxu0 0.0
      %394 = vmatpush1.msra.mxu0 0.0
      %395 = vmatprep.subr.mxu0 0.0
      %396 = vmatpush1.msra.mxu0 0.0
      %397 = vmatprep.subr.mxu0 0.0
      %398 = vmatpush1.msra.mxu0 0.0
      %399 = vmatprep.subr.mxu0 0.0
      %400 = vmatpush1.msra.mxu0 0.0
      %401 = vmatprep.subr.mxu0 0.0
      %402 = vmatpush1.msra.mxu0 0.0
      %403 = vmatprep.subr.mxu0 0.0
      %404 = vmatpush1.msra.mxu0 0.0
      %405 = vmatprep.subr.mxu0 0.0
      %406 = vmatpush1.msra.mxu0 0.0
      %407 = vmatprep.subr.mxu0 0.0
      %408 = vmatpush1.msra.mxu0 0.0
      %409 = vmatprep.subr.mxu0 0.0
      %410 = vmatpush1.msra.mxu0 0.0
      %411 = vmatprep.subr.mxu0 0.0
      %412 = vmatpush1.msra.mxu0 0.0
      %413 = vmatprep.subr.mxu0 0.0
      %414 = vmatpush1.msra.mxu0 0.0
      %415 = vmatprep.subr.mxu0 0.0
      %416 = vmatpush1.msra.mxu0 0.0
      %417 = vmatprep.subr.mxu0 0.0
      %418 = vmatpush1.msra.mxu0 0.0
      %419 = vmatprep.subr.mxu0 0.0
      %420 = vmatpush1.msra.mxu0 0.0
      %421 = vmatprep.subr.mxu0 0.0
      %422 = vmatpush1.msra.mxu0 0.0
      %423 = vmatprep.subr.mxu0 0.0
      %424 = vmatpush1.msra.mxu0 0.0
      %425 = vmatprep.subr.mxu0 0.0
      %426 = vmatpush1.msra.mxu0 0.0
      %427 = vmatprep.mubr.f32.mxu0 0.0
      %428 = vmatmul.mubr.f32.gmra.mrb[0].mxu0 %v361
      %v429 = vpop.f32.mrb[0].mxu0
      %v430 = vadd.f32 0.0, %v429
      %v431 = vpop.f32.mrb[0].mxu0
      %432 = vdwg.mxu0
      %v433 = vld [vmem:[%s3] sm:$0xff]
      %v434 = vld [vmem:[%s3 + $0x8] sm:$0xff]
      %v435 = vld [vmem:[%s3 + $0x10] sm:$0xff]
      %v436 = vld [vmem:[%s3 + $0x18] sm:$0xff]
      %v437 = vld [vmem:[%s4] sm:$0x1]
      %v439 = vlaneseq
      %v440 = vshrl.u32 %v439, 7
      %v441 = vsub.s32 0, %v440
      %v442 = vrot.slane %v437, %v441
      %vm444 = vcmask 261120
      %v446 = vsel %vm444, %v430, 0
      %448 = vmatprep.subr.mxu0 0.0
      %449 = vmatpush1.msra.mxu0 %v433
      %450 = vmatprep.subr.mxu0 0.0
      %451 = vmatpush1.msra.mxu0 %v434
      %452 = vmatprep.subr.mxu0 0.0
      %453 = vmatpush1.msra.mxu0 %v435
      %454 = vmatprep.subr.mxu0 0.0
      %455 = vmatpush1.msra.mxu0 %v436
      %456 = vmatprep.subr.mxu0 0.0
      %457 = vmatpush1.msra.mxu0 0.0
      %458 = vmatprep.subr.mxu0 0.0
      %459 = vmatpush1.msra.mxu0 0.0
      %460 = vmatprep.subr.mxu0 0.0
      %461 = vmatpush1.msra.mxu0 0.0
      %462 = vmatprep.subr.mxu0 0.0
      %463 = vmatpush1.msra.mxu0 0.0
      %464 = vmatprep.subr.mxu0 0.0
      %465 = vmatpush1.msra.mxu0 0.0
      %466 = vmatprep.subr.mxu0 0.0
      %467 = vmatpush1.msra.mxu0 0.0
      %468 = vmatprep.subr.mxu0 0.0
      %469 = vmatpush1.msra.mxu0 0.0
      %470 = vmatprep.subr.mxu0 0.0
      %471 = vmatpush1.msra.mxu0 0.0
      %472 = vmatprep.subr.mxu0 0.0
      %473 = vmatpush1.msra.mxu0 0.0
      %474 = vmatprep.subr.mxu0 0.0
      %475 = vmatpush1.msra.mxu0 0.0
      %476 = vmatprep.subr.mxu0 0.0
      %477 = vmatpush1.msra.mxu0 0.0
      %478 = vmatprep.subr.mxu0 0.0
      %479 = vmatpush1.msra.mxu0 0.0
      %480 = vmatprep.subr.mxu0 0.0
      %481 = vmatpush1.msra.mxu0 0.0
      %482 = vmatprep.subr.mxu0 0.0
      %483 = vmatpush1.msra.mxu0 0.0
      %484 = vmatprep.subr.mxu0 0.0
      %485 = vmatpush1.msra.mxu0 0.0
      %486 = vmatprep.subr.mxu0 0.0
      %487 = vmatpush1.msra.mxu0 0.0
      %488 = vmatprep.subr.mxu0 0.0
      %489 = vmatpush1.msra.mxu0 0.0
      %490 = vmatprep.subr.mxu0 0.0
      %491 = vmatpush1.msra.mxu0 0.0
      %492 = vmatprep.subr.mxu0 0.0
      %493 = vmatpush1.msra.mxu0 0.0
      %494 = vmatprep.subr.mxu0 0.0
      %495 = vmatpush1.msra.mxu0 0.0
      %496 = vmatprep.subr.mxu0 0.0
      %497 = vmatpush1.msra.mxu0 0.0
      %498 = vmatprep.subr.mxu0 0.0
      %499 = vmatpush1.msra.mxu0 0.0
      %500 = vmatprep.subr.mxu0 0.0
      %501 = vmatpush1.msra.mxu0 0.0
      %502 = vmatprep.subr.mxu0 0.0
      %503 = vmatpush1.msra.mxu0 0.0
      %504 = vmatprep.subr.mxu0 0.0
      %505 = vmatpush1.msra.mxu0 0.0
      %506 = vmatprep.subr.mxu0 0.0
      %507 = vmatpush1.msra.mxu0 0.0
      %508 = vmatprep.subr.mxu0 0.0
      %509 = vmatpush1.msra.mxu0 0.0
      %510 = vmatprep.subr.mxu0 0.0
      %511 = vmatpush1.msra.mxu0 0.0
      %512 = vmatprep.mubr.f32.mxu0 0.0
      %513 = vmatmul.mubr.f32.gmra.mrb[0].mxu0 %v446
      %v514 = vpop.f32.mrb[0].mxu0
      %v515 = vadd.f32 %v442, %v514
      %v516 = vpop.f32.mrb[0].mxu0
      %517 = vdwg.mxu0
      %518 = vst [vmem:[#allocation3] sm:$0xff] %v515
    $region29: #{tpu_custom_call.1} parent=1 // pred_fallthru
      _
    // Predicated region
    $region30: #{tpu_custom_call.1} parent=1 // pred_check
      _
    $region31: #{tpu_custom_call.1} parent=1 // pred_check_branch
      %520 = sbr.rel (0) target = $region33
    $region32: #{tpu_custom_call.1} parent=1 // pred_region
      %s522 = ssub.s32 128, 128
      %523 = vsyncadd [#allocation4], %s522
      %s525 = sshll.u32 [#allocation3], 4
      %s526 = int_to_ptr.vmem [resolvable:$true] %s525
      %528 = dma.vmem_to_hbm [thread:$0]  %s526, 128, %s5, [#allocation4]
    $region33: #{tpu_custom_call.1} parent=1 // pred_fallthru
      _
    // Predicated region
    $region34: #{tpu_custom_call.1} parent=1 // pred_check
      _
    $region35: #{tpu_custom_call.1} parent=1 // pred_check_branch
      %530 = sbr.rel (0) target = $region37
    $region36: #{tpu_custom_call.1} parent=1 // pred_region
      %531 = dma.done [#allocation4], 128
    $region37: #{tpu_custom_call.1} parent=1 // pred_fallthru
      _
    %532 = vsyncpa [#allocation4], 1

</llo_original>
